<compile_context>
chip_gen: v5e
topology: v5e:2x2
jax: 0.10.0
libtpu: 0.0.40
codegen_flags: <defaults>
</compile_context>

<pallas_src>
import jax
import jax.numpy as jnp
from jax.experimental import pallas as pl
from jax.experimental.pallas import tpu as pltpu

EPS = 1e-5
DIMS = [(12, 16), (16, 32), (32, 64), (64, 4)]      # (in, out) per Linear layer

# Row ranges of each (out, in) weight block inside the packed weight slab.
_W_ROWS = []
_row = 0
for _din, _dout in DIMS:
    _W_ROWS.append((_row, _row + _dout, _din))
    _row += _dout
_W_SLAB_ROWS = 128            # 116 rows used, padded
_W_SLAB_COLS = 64             # max fan-in
_P_SLAB_ROWS = 64             # max fan-out
_P_SLAB_COLS = 8              # 7 columns used: g1,be1, g2,be2, g3,be3, b4

_VMEM_RESERVE = 8 << 20       # headroom for compiler-internal scratch


# ----------------------------- kernel ---------------------------------------

def _linear_bn_relu(w_ref, p_ref, a, rows, gcol, *, out_dtype):
    """Linear (bias dropped: cancelled by BN mean) + BN + ReLU, fused, feature-major.

    a: (F_in, N) matmul dtype  ->  returns (F_out, N) in out_dtype.
    """
    r0, r1, cin = rows
    fout = r1 - r0
    w = w_ref[r0:r1, 0:cin]                                    # (fout, cin), matmul dtype
    h = jnp.dot(w, a, preferred_element_type=jnp.float32)      # (fout, N), f32 accumulation

    # One-pass batch statistics over the lane (batch) axis.
    inv_n = 1.0 / h.shape[-1]
    mean = jnp.sum(h, axis=-1, keepdims=True) * inv_n
    ex2 = jnp.sum(h * h, axis=-1, keepdims=True) * inv_n
    var = jnp.maximum(ex2 - mean * mean, 0.0)                  # clamp: f32 cancellation guard

    gamma = p_ref[0:fout, gcol:gcol + 1]
    beta = p_ref[0:fout, gcol + 1:gcol + 2]
    scale = gamma * jax.lax.rsqrt(var + EPS)                   # EUP rsqrt, folded scale
    shift = beta - mean * scale
    # Fused normalize + ReLU + cast: single pass over (fout, N).
    return jnp.maximum(h * scale + shift, 0.0).astype(out_dtype)


def _linear_bias(w_ref, p_ref, a, rows, bcol):
    """Final Linear layer (bias kept, no BN/ReLU): (F_in, N) -> (F_out, N) f32."""
    r0, r1, cin = rows
    fout = r1 - r0
    w = w_ref[r0:r1, 0:cin]
    h = jnp.dot(w, a, preferred_element_type=jnp.float32)
    return h + p_ref[0:fout, bcol:bcol + 1]                    # bias column, lane-broadcast


def mlp_kernel(x_ref, w_ref, p_ref, o_ref):
    # x_ref: (12, N)  matmul dtype, feature-major (batch on the 128-lane axis)
    # w_ref: (128, 64) packed (out, in) weight blocks, matmul dtype
    # p_ref: (64, 8)   packed f32 per-feature params (gamma/beta per BN layer, b4)
    # o_ref: (4, N)    f32, lane-dense output
    mdt = x_ref.dtype
    a = x_ref[...]
    a = _linear_bn_relu(w_ref, p_ref, a, _W_ROWS[0], 0, out_dtype=mdt)
    a = _linear_bn_relu(w_ref, p_ref, a, _W_ROWS[1], 2, out_dtype=mdt)
    a = _linear_bn_relu(w_ref, p_ref, a, _W_ROWS[2], 4, out_dtype=mdt)
    o_ref[...] = _linear_bias(w_ref, p_ref, a, _W_ROWS[3], 6)


# ----------------------------- VMEM budgeting ---------------------------------

def _vmem_capacity_bytes():
    try:
        return int(pltpu.get_tpu_info().vmem_capacity_bytes)
    except Exception:
        return 64 << 20            # conservative fallback (v7x per-TC)


def _per_row_bytes(matmul_bytes):
    # All matmul-dtype activations + the widest live f32 pre-BN tensor (64) +
    # the f32 output rows, with 2x headroom for compiler temporaries.
    acts = (12 + 16 + 32 + 64) * matmul_bytes
    peak_f32 = 64 * 4 + 4 * 4
    return 2 * (acts + peak_f32)


def _fixed_bytes():
    return (_W_SLAB_ROWS * _W_SLAB_COLS * 4
            + _P_SLAB_ROWS * 128 * 4          # lane-padded param slab
            + (2 << 20))


def max_rows_per_call(matmul_dtype=jnp.bfloat16):
    """Largest resident batch per call for this chip generation's VMEM."""
    cap = _vmem_capacity_bytes()
    mb = jnp.dtype(matmul_dtype).itemsize
    rows = (cap - _VMEM_RESERVE - _fixed_bytes()) // _per_row_bytes(mb)
    return int(max(1024, (rows // 1024) * 1024))


def _vmem_limit_bytes(n, matmul_bytes):
    cap = _vmem_capacity_bytes()
    need = n * _per_row_bytes(matmul_bytes) + _fixed_bytes()
    return int(min(max(need, 8 << 20), cap - _VMEM_RESERVE))


# ----------------------------- wrapper ---------------------------------------

def pack_params(params, matmul_dtype):
    """Pack the 4 weights into one slab and gamma/beta/b4 into another.

    Pre-BN biases b1..b3 are intentionally NOT packed: they are algebraically
    cancelled by the training-mode BN mean subtraction.
    """
    w_slab = jnp.zeros((_W_SLAB_ROWS, _W_SLAB_COLS), matmul_dtype)
    for i, (r0, r1, cin) in enumerate(_W_ROWS):
        w_slab = w_slab.at[r0:r1, 0:cin].set(params[f"w{i + 1}"].astype(matmul_dtype))

    p_slab = jnp.zeros((_P_SLAB_ROWS, _P_SLAB_COLS), jnp.float32)
    for i, (_, dout) in enumerate(DIMS[:3]):                      # BN layers
        p_slab = p_slab.at[0:dout, 2 * i].set(params[f"g{i + 1}"].astype(jnp.float32))
        p_slab = p_slab.at[0:dout, 2 * i + 1].set(params[f"be{i + 1}"].astype(jnp.float32))
    p_slab = p_slab.at[0:DIMS[3][1], 6].set(params["b4"].astype(jnp.float32))
    return w_slab, p_slab


def mlp_ori_forward(x, params, matmul_dtype=jnp.bfloat16):
    """x: (N, 12) float32.  params: PyTorch-layout weights (out, in) and (out,) vectors."""
    n, din = x.shape
    assert din == 12
    # TODO(synk): two-pass gridded BN variant (and v7x 2-TC core_map split) for
    # batches above the per-chip resident cap.
    assert n <= max_rows_per_call(matmul_dtype), "batch exceeds per-call VMEM-resident cap"

    w_slab, p_slab = pack_params(params, matmul_dtype)
    x_t = x.T.astype(matmul_dtype)                       # (12, N): batch on the lane axis

    vmem = pl.BlockSpec(memory_space=pltpu.MemorySpace.VMEM)
    out_t = pl.pallas_call(
        mlp_kernel,
        out_shape=jax.ShapeDtypeStruct((4, n), jnp.float32),
        in_specs=[vmem, vmem, vmem],
        out_specs=vmem,
        compiler_params=pltpu.CompilerParams(
            vmem_limit_bytes=_vmem_limit_bytes(n, jnp.dtype(matmul_dtype).itemsize)),
    )(x_t, w_slab, p_slab)
    return out_t.T                                       # back to PyTorch's (N, 4)


# ----------------------------- reference / init ------------------------------

def init_params(key):
    """Deterministic synthetic parameters matching MLP_Ori (PyTorch-native layouts)."""
    params = {}
    keys = jax.random.split(key, 2 * len(DIMS))
    for i, (din, dout) in enumerate(DIMS):
        bound = 1.0 / jnp.sqrt(din)                      # PyTorch default Linear init range
        params[f"w{i + 1}"] = jax.random.uniform(keys[2 * i], (dout, din), jnp.float32, -bound, bound)
        params[f"b{i + 1}"] = jax.random.uniform(keys[2 * i + 1], (dout,), jnp.float32, -bound, bound)
    for i, (_, dout) in enumerate(DIMS[:3]):             # BatchNorm1d default affine init
        params[f"g{i + 1}"] = jnp.ones((dout,), jnp.float32)
        params[f"be{i + 1}"] = jnp.zeros((dout,), jnp.float32)
    return params


def mlp_ori_reference(x, params):
    """Pure-JAX f32 reference, PyTorch-faithful (bias + centered two-pass BN stats)."""
    hp = jax.lax.Precision.HIGHEST
    a = x
    for i in range(1, 4):
        h = jnp.dot(a, params[f"w{i}"].T, precision=hp) + params[f"b{i}"]
        mean = jnp.mean(h, axis=0)
        hc = h - mean
        var = jnp.mean(hc * hc, axis=0)
        a = jnp.maximum(hc * (params[f"g{i}"] * jax.lax.rsqrt(var + EPS)) + params[f"be{i}"], 0.0)
    return jnp.dot(a, params["w4"].T, precision=hp) + params["b4"]


if __name__ == "__main__":
    key = jax.random.PRNGKey(0)
    k_x, k_p = jax.random.split(key)
    x = jax.random.normal(k_x, (8, 12), dtype=jnp.float32)   # (batch=8, in_features=12)
    params = init_params(k_p)

    # Optimized (bf16-MXU) path.
    out = jax.block_until_ready(mlp_ori_forward(x, params))
    assert out.shape == (8, 4) and out.dtype == jnp.float32
    assert bool(jnp.all(jnp.isfinite(out)))

    # Exact-parity (f32) path vs. pure-JAX reference.
    out_f32 = jax.block_until_ready(mlp_ori_forward(x, params, matmul_dtype=jnp.float32))
    ref = mlp_ori_reference(x, params)
    assert jnp.allclose(out_f32, ref, atol=2e-3, rtol=2e-3), float(jnp.max(jnp.abs(out_f32 - ref)))

    print("KERNEL_OK")
</pallas_src>

<mosaic_0001>
module attributes {stable_mosaic.version = 11 : i64} {
  func.func @mlp_kernel(%arg0: memref<12x8xbf16, #tpu.memory_space<vmem>>, %arg1: memref<128x64xbf16, #tpu.memory_space<vmem>>, %arg2: memref<64x8xf32, #tpu.memory_space<vmem>>, %arg3: memref<4x8xf32, #tpu.memory_space<vmem>>) attributes {dimension_semantics = [], scalar_prefetch = 0 : i64, scratch_operands = 0 : i64, tpu.core_type = #tpu.core_type<tc>} {
    %c0 = arith.constant 0 : index
    %c0_0 = arith.constant 0 : index
    %0 = vector.load %arg0[%c0, %c0_0] : memref<12x8xbf16, #tpu.memory_space<vmem>>, vector<12x8xbf16>
    %c0_1 = arith.constant 0 : index
    %c0_2 = arith.constant 0 : index
    %1 = vector.load %arg1[%c0_1, %c0_2] : memref<128x64xbf16, #tpu.memory_space<vmem>>, vector<16x12xbf16>
    %cst = arith.constant dense<0.000000e+00> : vector<16x8xf32>
    %2 = tpu.matmul %1, %0, %cst {dimension_numbers = #tpu.dot_dimension_numbers<[1], [0], [0], [1], [0, 0, 1, 1], [], []>} : vector<16x12xbf16>, vector<12x8xbf16>, vector<16x8xf32> -> vector<16x8xf32>
    %cst_3 = arith.constant dense<0.000000e+00> : vector<16xf32>
    %3 = vector.multi_reduction <add>, %2, %cst_3 [1] : vector<16x8xf32> to vector<16xf32>
    %4 = vector.shape_cast %3 : vector<16xf32> to vector<16x1xf32>
    %cst_4 = arith.constant 1.250000e-01 : f32
    %5 = vector.broadcast %cst_4 : f32 to vector<16x1xf32>
    %6 = arith.mulf %4, %5 : vector<16x1xf32>
    %7 = arith.mulf %2, %2 : vector<16x8xf32>
    %cst_5 = arith.constant dense<0.000000e+00> : vector<16xf32>
    %8 = vector.multi_reduction <add>, %7, %cst_5 [1] : vector<16x8xf32> to vector<16xf32>
    %9 = vector.shape_cast %8 : vector<16xf32> to vector<16x1xf32>
    %cst_6 = arith.constant 1.250000e-01 : f32
    %10 = vector.broadcast %cst_6 : f32 to vector<16x1xf32>
    %11 = arith.mulf %9, %10 : vector<16x1xf32>
    %12 = arith.mulf %6, %6 : vector<16x1xf32>
    %13 = arith.subf %11, %12 : vector<16x1xf32>
    %cst_7 = arith.constant 0.000000e+00 : f32
    %14 = vector.broadcast %cst_7 : f32 to vector<16x1xf32>
    %15 = arith.maximumf %13, %14 : vector<16x1xf32>
    %c0_8 = arith.constant 0 : index
    %c0_9 = arith.constant 0 : index
    %16 = vector.load %arg2[%c0_8, %c0_9] : memref<64x8xf32, #tpu.memory_space<vmem>>, vector<16x1xf32>
    %c0_10 = arith.constant 0 : index
    %c1 = arith.constant 1 : index
    %17 = vector.load %arg2[%c0_10, %c1] : memref<64x8xf32, #tpu.memory_space<vmem>>, vector<16x1xf32>
    %cst_11 = arith.constant 9.99999974E-6 : f32
    %18 = vector.broadcast %cst_11 : f32 to vector<16x1xf32>
    %19 = arith.addf %15, %18 : vector<16x1xf32>
    %20 = math.rsqrt %19 : vector<16x1xf32>
    %21 = arith.mulf %16, %20 : vector<16x1xf32>
    %22 = arith.mulf %6, %21 : vector<16x1xf32>
    %23 = arith.subf %17, %22 : vector<16x1xf32>
    %24 = vector.broadcast %21 : vector<16x1xf32> to vector<16x8xf32>
    %25 = arith.mulf %2, %24 : vector<16x8xf32>
    %26 = vector.broadcast %23 : vector<16x1xf32> to vector<16x8xf32>
    %27 = arith.addf %25, %26 : vector<16x8xf32>
    %cst_12 = arith.constant 0.000000e+00 : f32
    %28 = vector.broadcast %cst_12 : f32 to vector<16x8xf32>
    %29 = arith.maximumf %27, %28 : vector<16x8xf32>
    %30 = arith.truncf %29 : vector<16x8xf32> to vector<16x8xbf16>
    %c16 = arith.constant 16 : index
    %c0_13 = arith.constant 0 : index
    %31 = vector.load %arg1[%c16, %c0_13] : memref<128x64xbf16, #tpu.memory_space<vmem>>, vector<32x16xbf16>
    %cst_14 = arith.constant dense<0.000000e+00> : vector<32x8xf32>
    %32 = tpu.matmul %31, %30, %cst_14 {dimension_numbers = #tpu.dot_dimension_numbers<[1], [0], [0], [1], [0, 0, 1, 1], [], []>} : vector<32x16xbf16>, vector<16x8xbf16>, vector<32x8xf32> -> vector<32x8xf32>
    %cst_15 = arith.constant dense<0.000000e+00> : vector<32xf32>
    %33 = vector.multi_reduction <add>, %32, %cst_15 [1] : vector<32x8xf32> to vector<32xf32>
    %34 = vector.shape_cast %33 : vector<32xf32> to vector<32x1xf32>
    %cst_16 = arith.constant 1.250000e-01 : f32
    %35 = vector.broadcast %cst_16 : f32 to vector<32x1xf32>
    %36 = arith.mulf %34, %35 : vector<32x1xf32>
    %37 = arith.mulf %32, %32 : vector<32x8xf32>
    %cst_17 = arith.constant dense<0.000000e+00> : vector<32xf32>
    %38 = vector.multi_reduction <add>, %37, %cst_17 [1] : vector<32x8xf32> to vector<32xf32>
    %39 = vector.shape_cast %38 : vector<32xf32> to vector<32x1xf32>
    %cst_18 = arith.constant 1.250000e-01 : f32
    %40 = vector.broadcast %cst_18 : f32 to vector<32x1xf32>
    %41 = arith.mulf %39, %40 : vector<32x1xf32>
    %42 = arith.mulf %36, %36 : vector<32x1xf32>
    %43 = arith.subf %41, %42 : vector<32x1xf32>
    %cst_19 = arith.constant 0.000000e+00 : f32
    %44 = vector.broadcast %cst_19 : f32 to vector<32x1xf32>
    %45 = arith.maximumf %43, %44 : vector<32x1xf32>
    %c0_20 = arith.constant 0 : index
    %c2 = arith.constant 2 : index
    %46 = vector.load %arg2[%c0_20, %c2] : memref<64x8xf32, #tpu.memory_space<vmem>>, vector<32x1xf32>
    %c0_21 = arith.constant 0 : index
    %c3 = arith.constant 3 : index
    %47 = vector.load %arg2[%c0_21, %c3] : memref<64x8xf32, #tpu.memory_space<vmem>>, vector<32x1xf32>
    %cst_22 = arith.constant 9.99999974E-6 : f32
    %48 = vector.broadcast %cst_22 : f32 to vector<32x1xf32>
    %49 = arith.addf %45, %48 : vector<32x1xf32>
    %50 = math.rsqrt %49 : vector<32x1xf32>
    %51 = arith.mulf %46, %50 : vector<32x1xf32>
    %52 = arith.mulf %36, %51 : vector<32x1xf32>
    %53 = arith.subf %47, %52 : vector<32x1xf32>
    %54 = vector.broadcast %51 : vector<32x1xf32> to vector<32x8xf32>
    %55 = arith.mulf %32, %54 : vector<32x8xf32>
    %56 = vector.broadcast %53 : vector<32x1xf32> to vector<32x8xf32>
    %57 = arith.addf %55, %56 : vector<32x8xf32>
    %cst_23 = arith.constant 0.000000e+00 : f32
    %58 = vector.broadcast %cst_23 : f32 to vector<32x8xf32>
    %59 = arith.maximumf %57, %58 : vector<32x8xf32>
    %60 = arith.truncf %59 : vector<32x8xf32> to vector<32x8xbf16>
    %c48 = arith.constant 48 : index
    %c0_24 = arith.constant 0 : index
    %61 = vector.load %arg1[%c48, %c0_24] : memref<128x64xbf16, #tpu.memory_space<vmem>>, vector<64x32xbf16>
    %cst_25 = arith.constant dense<0.000000e+00> : vector<64x8xf32>
    %62 = tpu.matmul %61, %60, %cst_25 {dimension_numbers = #tpu.dot_dimension_numbers<[1], [0], [0], [1], [0, 0, 1, 1], [], []>} : vector<64x32xbf16>, vector<32x8xbf16>, vector<64x8xf32> -> vector<64x8xf32>
    %cst_26 = arith.constant dense<0.000000e+00> : vector<64xf32>
    %63 = vector.multi_reduction <add>, %62, %cst_26 [1] : vector<64x8xf32> to vector<64xf32>
    %64 = vector.shape_cast %63 : vector<64xf32> to vector<64x1xf32>
    %cst_27 = arith.constant 1.250000e-01 : f32
    %65 = vector.broadcast %cst_27 : f32 to vector<64x1xf32>
    %66 = arith.mulf %64, %65 : vector<64x1xf32>
    %67 = arith.mulf %62, %62 : vector<64x8xf32>
    %cst_28 = arith.constant dense<0.000000e+00> : vector<64xf32>
    %68 = vector.multi_reduction <add>, %67, %cst_28 [1] : vector<64x8xf32> to vector<64xf32>
    %69 = vector.shape_cast %68 : vector<64xf32> to vector<64x1xf32>
    %cst_29 = arith.constant 1.250000e-01 : f32
    %70 = vector.broadcast %cst_29 : f32 to vector<64x1xf32>
    %71 = arith.mulf %69, %70 : vector<64x1xf32>
    %72 = arith.mulf %66, %66 : vector<64x1xf32>
    %73 = arith.subf %71, %72 : vector<64x1xf32>
    %cst_30 = arith.constant 0.000000e+00 : f32
    %74 = vector.broadcast %cst_30 : f32 to vector<64x1xf32>
    %75 = arith.maximumf %73, %74 : vector<64x1xf32>
    %c0_31 = arith.constant 0 : index
    %c4 = arith.constant 4 : index
    %76 = vector.load %arg2[%c0_31, %c4] : memref<64x8xf32, #tpu.memory_space<vmem>>, vector<64x1xf32>
    %c0_32 = arith.constant 0 : index
    %c5 = arith.constant 5 : index
    %77 = vector.load %arg2[%c0_32, %c5] : memref<64x8xf32, #tpu.memory_space<vmem>>, vector<64x1xf32>
    %cst_33 = arith.constant 9.99999974E-6 : f32
    %78 = vector.broadcast %cst_33 : f32 to vector<64x1xf32>
    %79 = arith.addf %75, %78 : vector<64x1xf32>
    %80 = math.rsqrt %79 : vector<64x1xf32>
    %81 = arith.mulf %76, %80 : vector<64x1xf32>
    %82 = arith.mulf %66, %81 : vector<64x1xf32>
    %83 = arith.subf %77, %82 : vector<64x1xf32>
    %84 = vector.broadcast %81 : vector<64x1xf32> to vector<64x8xf32>
    %85 = arith.mulf %62, %84 : vector<64x8xf32>
    %86 = vector.broadcast %83 : vector<64x1xf32> to vector<64x8xf32>
    %87 = arith.addf %85, %86 : vector<64x8xf32>
    %cst_34 = arith.constant 0.000000e+00 : f32
    %88 = vector.broadcast %cst_34 : f32 to vector<64x8xf32>
    %89 = arith.maximumf %87, %88 : vector<64x8xf32>
    %90 = arith.truncf %89 : vector<64x8xf32> to vector<64x8xbf16>
    %c112 = arith.constant 112 : index
    %c0_35 = arith.constant 0 : index
    %91 = vector.load %arg1[%c112, %c0_35] : memref<128x64xbf16, #tpu.memory_space<vmem>>, vector<4x64xbf16>
    %cst_36 = arith.constant dense<0.000000e+00> : vector<4x8xf32>
    %92 = tpu.matmul %91, %90, %cst_36 {dimension_numbers = #tpu.dot_dimension_numbers<[1], [0], [0], [1], [0, 0, 1, 1], [], []>} : vector<4x64xbf16>, vector<64x8xbf16>, vector<4x8xf32> -> vector<4x8xf32>
    %c0_37 = arith.constant 0 : index
    %c6 = arith.constant 6 : index
    %93 = vector.load %arg2[%c0_37, %c6] : memref<64x8xf32, #tpu.memory_space<vmem>>, vector<4x1xf32>
    %94 = vector.broadcast %93 : vector<4x1xf32> to vector<4x8xf32>
    %95 = arith.addf %92, %94 : vector<4x8xf32>
    %c0_38 = arith.constant 0 : index
    %c0_39 = arith.constant 0 : index
    %96 = vector.load %arg3[%c0_38, %c0_39] : memref<4x8xf32, #tpu.memory_space<vmem>>, vector<4x8xf32>
    tpu.vector_store %arg3[%c0_38, %c0_39], %95 {strides = array<i32>} : memref<4x8xf32, #tpu.memory_space<vmem>>, vector<4x8xf32>,
    return
  }
}

</mosaic_0001>

<llo_original>
// kernel: tpu_custom_call.1
$region0: #{tpu_custom_call.1}
  #allocation0 [shape = 'u32[]', space=smem, size = 0x4, offset = 0x4, fixed_abs, tag = 'smem constant byte address 0x4 - core index']
  #allocation1 [shape = 'u32[72,128]{1,0:T(1,128)}', space=vmem, size = 0x9000, scoped, tag = 'internal scratch']
  %s0 = inlined_call_operand.vmem [shape: bf16[12,8], index: 0, kind: input, shape index: {}]
  %s1 = inlined_call_operand.vmem [shape: bf16[128,64], index: 1, kind: input, shape index: {}]
  %s2 = inlined_call_operand.vmem [shape: f32[64,8], index: 2, kind: input, shape index: {}]
  %s3 = inlined_call_operand.hbm [shape: f32[4,8], index: 3, kind: output, shape index: {}]
  %s4 = sld [smem:[#allocation0]]
  $region22: #{tpu_custom_call.1} parent=0
    _
  %s6 = ssub.s32 1, %s4
  %s7 = scalar_select 0, %s6, %s4
  $region1: #{tpu_custom_call.1} parent=0
    #allocation2 [shape = 'u8[2048]{0}', space=vmem, size = 0x800, scoped, tag = 'output window, operand 0, single buffered']
    #allocation3 [shape = 's32[1]{0}', space=sflag, size = 0x4, scoped, tag = 'scoped memory for tpu_custom_call.1']
    %8 = vsyncpa [#allocation3], 0
    // Predicated region
    $region2: #{tpu_custom_call.1} parent=1 // pred_check
      _
    $region3: #{tpu_custom_call.1} parent=1 // pred_check_branch
      %10 = sbr.rel (0) target = $region5
    $region4: #{tpu_custom_call.1} parent=1 // pred_region
      _
    $region5: #{tpu_custom_call.1} parent=1 // pred_fallthru
      _
    // Predicated region
    $region6: #{tpu_custom_call.1} parent=1 // pred_check
      _
    $region7: #{tpu_custom_call.1} parent=1 // pred_check_branch
      %12 = sbr.rel (0) target = $region9
    $region8: #{tpu_custom_call.1} parent=1 // pred_region
      _
    $region9: #{tpu_custom_call.1} parent=1 // pred_fallthru
      _
    // Predicated region
    $region10: #{tpu_custom_call.1} parent=1 // pred_check
      _
    $region11: #{tpu_custom_call.1} parent=1 // pred_check_branch
      %14 = sbr.rel (0) target = $region13
    $region12: #{tpu_custom_call.1} parent=1 // pred_region
      _
    $region13: #{tpu_custom_call.1} parent=1 // pred_fallthru
      _
    %v16 = vld [vmem:[%s0] sm:$0xf]
    %v17 = vld [vmem:[%s0 + $0x4] sm:$0x3]
    %v18 = vld [vmem:[%s1] sm:$0xf]
    %v19 = vld [vmem:[%s1 + $0x4] sm:$0xf]
    %v22 = vunpack.c.l.b16 %v18
    %v23 = vunpack.c.l.b16 %v19
    %v24 = vpack.c.b16 %v23, %v22
    %v27 = vunpack.c.l.b16 %v16
    %v28 = vunpack.c.l.b16 %v17
    %v29 = vpack.c.b16 %v28, %v27
    %vm30 = vcmask 97280
    %v32 = vsel %vm30, %v24, 0
    %vm34 = vcmask 1045504
    %v36 = vsel %vm34, %v29, 0
    %38 = vmatpush.bf16.msra.mxu0 0
    %39 = vmatpush.bf16.msra.mxu0 0
    %40 = vmatpush.bf16.msra.mxu0 0
    %41 = vmatpush.bf16.msra.mxu0 0
    %42 = vmatpush.bf16.msra.mxu0 0
    %43 = vmatpush.bf16.msra.mxu0 0
    %44 = vmatpush.bf16.msra.mxu0 0
    %45 = vmatpush.bf16.msra.mxu0 %v36
    %46 = vmatmul.bf16.gmra.mxu0 %v32
    %v47 = vpop.f32.mrf.mxu0
    %v48 = vadd.f32 0.0, %v47
    %v49 = vpop.f32.mrf.mxu0
    %v50 = vadd.f32 0.0, %v49
    %51 = vdwg.mxu0
    %vm52 = vcmask 64512
    %v53 = vsel %vm52, %v48, 0.0
    %54 = vadd.xlane.f32.xlu0 %v53
    %v55 = vpop.xlane.xlu0 %54
    %v56 = vsel %vm52, %v50, 0.0
    %57 = vadd.xlane.f32.xlu0 %v56
    %v58 = vpop.xlane.xlu0 %57
    %v59 = vmul.f32 %v55, 0.125
    %v60 = vmul.f32 %v58, 0.125
    %v61 = vmul.f32 %v48, %v48
    %v62 = vmul.f32 %v50, %v50
    %v63 = vsel %vm52, %v61, 0.0
    %64 = vadd.xlane.f32.xlu0 %v63
    %v65 = vpop.xlane.xlu0 %64
    %v66 = vsel %vm52, %v62, 0.0
    %67 = vadd.xlane.f32.xlu0 %v66
    %v68 = vpop.xlane.xlu0 %67
    %v69 = vmul.f32 %v65, 0.125
    %v70 = vmul.f32 %v68, 0.125
    %v71 = vmul.f32 %v59, %v59
    %v72 = vmul.f32 %v60, %v60
    %v73 = vsub.f32 %v69, %v71
    %v74 = vsub.f32 %v70, %v72
    %v75 = vmax.f32 %v73, 0.0
    %v76 = vmax.f32 %v74, 0.0
    %v77 = vld [vmem:[%s2] sm:$0xff]
    %v78 = vld [vmem:[%s2 + $0x8] sm:$0xff]
    %v79 = vadd.f32 %v75, 1e-05
    %v80 = vadd.f32 %v76, 1e-05
    %v81 = vrsqrt.pop %v79
    %v82 = vmul.f32 %v81, %v79
    %v83 = vmul.f32 %v82, %v81
    %v84 = vmul.f32 0.5, %v83
    %v85 = vsub.f32 1.5, %v84
    %v86 = vmul.f32 %v81, %v85
    %vm87 = vweird.f32 %v79
    %vm88 = vweird.f32 %v81
    %vm89 = vmor %vm87, %vm88
    %v90 = vsel %vm89, %v81, %v86
    %v91 = vrsqrt.pop %v80
    %v92 = vmul.f32 %v91, %v80
    %v93 = vmul.f32 %v92, %v91
    %v94 = vmul.f32 0.5, %v93
    %v95 = vsub.f32 1.5, %v94
    %v96 = vmul.f32 %v91, %v95
    %vm97 = vweird.f32 %v80
    %vm98 = vweird.f32 %v91
    %vm99 = vmor %vm97, %vm98
    %v100 = vsel %vm99, %v91, %v96
    %v101 = vmul.f32 %v77, %v90
    %v102 = vmul.f32 %v78, %v100
    %v103 = vmul.f32 %v59, %v101
    %v104 = vmul.f32 %v60, %v102
    %107 = vrot.lane.b32.xlu0 %v103, 1
    %v108 = vpop.permute.xlu0 %107
    %109 = vrot.lane.b32.xlu0 %v104, 1
    %v110 = vpop.permute.xlu0 %109
    %v113 = vsub.f32 %v77, %v108
    %v114 = vsub.f32 %v78, %v110
    %116 = vset.pattern.permute.xlu0 0
    %117 = vperm.xlu0 %116, %v101
    %v118 = vpop.permute.xlu0 %117
    %121 = vset.pattern.permute.xlu0 0
    %122 = vperm.xlu0 %121, %v102
    %v123 = vpop.permute.xlu0 %122
    %v125 = vmul.f32 %v48, %v118
    %v126 = vmul.f32 %v50, %v123
    %128 = vset.pattern.permute.xlu0 1
    %129 = vperm.xlu0 %128, %v113
    %v130 = vpop.permute.xlu0 %129
    %133 = vset.pattern.permute.xlu0 1
    %134 = vperm.xlu0 %133, %v114
    %v135 = vpop.permute.xlu0 %134
    %v137 = vadd.f32 %v125, %v130
    %v138 = vadd.f32 %v126, %v135
    %v139 = vmax.f32 %v137, 0.0
    %v140 = vmax.f32 %v138, 0.0
    %v141 = vpack.c.bf16 %v140, %v139
    %v142 = vld [vmem:[%s1 + $0x8] sm:$0xf]
    %v143 = vld [vmem:[%s1 + $0xc] sm:$0xf]
    %v144 = vld [vmem:[%s1 + $0x10] sm:$0xf]
    %v145 = vld [vmem:[%s1 + $0x14] sm:$0xf]
    %v150 = vunpack.c.l.b16 %v142
    %v151 = vunpack.c.l.b16 %v143
    %v152 = vunpack.c.l.b16 %v144
    %v153 = vunpack.c.l.b16 %v145
    %v154 = vpack.c.b16 %v151, %v150
    %v155 = vpack.c.b16 %v153, %v152
    %vm156 = vcmask 130048
    %v158 = vsel %vm156, %v154, 0
    %v161 = vsel %vm156, %v155, 0
    %163 = vmatpush.bf16.msra.mxu0 0
    %164 = vmatpush.bf16.msra.mxu0 0
    %165 = vmatpush.bf16.msra.mxu0 0
    %166 = vmatpush.bf16.msra.mxu0 0
    %167 = vmatpush.bf16.msra.mxu0 0
    %168 = vmatpush.bf16.msra.mxu0 0
    %169 = vmatpush.bf16.msra.mxu0 0
    %170 = vmatpush.bf16.msra.mxu0 %v141
    %171 = vmatmul.bf16.gmra.mxu0 %v158
    %v172 = vpop.f32.mrf.mxu0
    %v173 = vadd.f32 0.0, %v172
    %v174 = vpop.f32.mrf.mxu0
    %v175 = vadd.f32 0.0, %v174
    %176 = vmatmul.bf16.gmra.mxu0 %v161
    %v177 = vpop.f32.mrf.mxu0
    %v178 = vadd.f32 0.0, %v177
    %v179 = vpop.f32.mrf.mxu0
    %v180 = vadd.f32 0.0, %v179
    %181 = vdwg.mxu0
    %v182 = vsel %vm52, %v173, 0.0
    %183 = vadd.xlane.f32.xlu0 %v182
    %v184 = vpop.xlane.xlu0 %183
    %v185 = vsel %vm52, %v175, 0.0
    %186 = vadd.xlane.f32.xlu0 %v185
    %v187 = vpop.xlane.xlu0 %186
    %v188 = vsel %vm52, %v178, 0.0
    %189 = vadd.xlane.f32.xlu0 %v188
    %v190 = vpop.xlane.xlu0 %189
    %v191 = vsel %vm52, %v180, 0.0
    %192 = vadd.xlane.f32.xlu0 %v191
    %v193 = vpop.xlane.xlu0 %192
    %v194 = vmul.f32 %v184, 0.125
    %v195 = vmul.f32 %v187, 0.125
    %v196 = vmul.f32 %v190, 0.125
    %v197 = vmul.f32 %v193, 0.125
    %v198 = vmul.f32 %v173, %v173
    %v199 = vmul.f32 %v175, %v175
    %v200 = vmul.f32 %v178, %v178
    %v201 = vmul.f32 %v180, %v180
    %v202 = vsel %vm52, %v198, 0.0
    %203 = vadd.xlane.f32.xlu0 %v202
    %v204 = vpop.xlane.xlu0 %203
    %v205 = vsel %vm52, %v199, 0.0
    %206 = vadd.xlane.f32.xlu0 %v205
    %v207 = vpop.xlane.xlu0 %206
    %v208 = vsel %vm52, %v200, 0.0
    %209 = vadd.xlane.f32.xlu0 %v208
    %v210 = vpop.xlane.xlu0 %209
    %v211 = vsel %vm52, %v201, 0.0
    %212 = vadd.xlane.f32.xlu0 %v211
    %v213 = vpop.xlane.xlu0 %212
    %v214 = vmul.f32 %v204, 0.125
    %v215 = vmul.f32 %v207, 0.125
    %v216 = vmul.f32 %v210, 0.125
    %v217 = vmul.f32 %v213, 0.125
    %v218 = vmul.f32 %v194, %v194
    %v219 = vmul.f32 %v195, %v195
    %v220 = vmul.f32 %v196, %v196
    %v221 = vmul.f32 %v197, %v197
    %v222 = vsub.f32 %v214, %v218
    %v223 = vsub.f32 %v215, %v219
    %v224 = vsub.f32 %v216, %v220
    %v225 = vsub.f32 %v217, %v221
    %v226 = vmax.f32 %v222, 0.0
    %v227 = vmax.f32 %v223, 0.0
    %v228 = vmax.f32 %v224, 0.0
    %v229 = vmax.f32 %v225, 0.0
    %v230 = vld [vmem:[%s2] sm:$0xff]
    %v231 = vld [vmem:[%s2 + $0x8] sm:$0xff]
    %v232 = vld [vmem:[%s2 + $0x10] sm:$0xff]
    %v233 = vld [vmem:[%s2 + $0x18] sm:$0xff]
    %v234 = vadd.f32 %v226, 1e-05
    %v235 = vadd.f32 %v227, 1e-05
    %v236 = vadd.f32 %v228, 1e-05
    %v237 = vadd.f32 %v229, 1e-05
    %v238 = vrsqrt.pop %v234
    %v239 = vmul.f32 %v238, %v234
    %v240 = vmul.f32 %v239, %v238
    %v241 = vmul.f32 0.5, %v240
    %v242 = vsub.f32 1.5, %v241
    %v243 = vmul.f32 %v238, %v242
    %vm244 = vweird.f32 %v234
    %vm245 = vweird.f32 %v238
    %vm246 = vmor %vm244, %vm245
    %v247 = vsel %vm246, %v238, %v243
    %v248 = vrsqrt.pop %v235
    %v249 = vmul.f32 %v248, %v235
    %v250 = vmul.f32 %v249, %v248
    %v251 = vmul.f32 0.5, %v250
    %v252 = vsub.f32 1.5, %v251
    %v253 = vmul.f32 %v248, %v252
    %vm254 = vweird.f32 %v235
    %vm255 = vweird.f32 %v248
    %vm256 = vmor %vm254, %vm255
    %v257 = vsel %vm256, %v248, %v253
    %v258 = vrsqrt.pop %v236
    %v259 = vmul.f32 %v258, %v236
    %v260 = vmul.f32 %v259, %v258
    %v261 = vmul.f32 0.5, %v260
    %v262 = vsub.f32 1.5, %v261
    %v263 = vmul.f32 %v258, %v262
    %vm264 = vweird.f32 %v236
    %vm265 = vweird.f32 %v258
    %vm266 = vmor %vm264, %vm265
    %v267 = vsel %vm266, %v258, %v263
    %v268 = vrsqrt.pop %v237
    %v269 = vmul.f32 %v268, %v237
    %v270 = vmul.f32 %v269, %v268
    %v271 = vmul.f32 0.5, %v270
    %v272 = vsub.f32 1.5, %v271
    %v273 = vmul.f32 %v268, %v272
    %vm274 = vweird.f32 %v237
    %vm275 = vweird.f32 %v268
    %vm276 = vmor %vm274, %vm275
    %v277 = vsel %vm276, %v268, %v273
    %v278 = vmul.f32 %v230, %v247
    %v279 = vmul.f32 %v231, %v257
    %v280 = vmul.f32 %v232, %v267
    %v281 = vmul.f32 %v233, %v277
    %v282 = vmul.f32 %v194, %v278
    %v283 = vmul.f32 %v195, %v279
    %v284 = vmul.f32 %v196, %v280
    %v285 = vmul.f32 %v197, %v281
    %290 = vrot.lane.b32.xlu0 %v282, 1
    %v291 = vpop.permute.xlu0 %290
    %292 = vrot.lane.b32.xlu0 %v283, 1
    %v293 = vpop.permute.xlu0 %292
    %294 = vrot.lane.b32.xlu0 %v284, 1
    %v295 = vpop.permute.xlu0 %294
    %296 = vrot.lane.b32.xlu0 %v285, 1
    %v297 = vpop.permute.xlu0 %296
    %v302 = vsub.f32 %v230, %v291
    %v303 = vsub.f32 %v231, %v293
    %v304 = vsub.f32 %v232, %v295
    %v305 = vsub.f32 %v233, %v297
    %307 = vset.pattern.permute.xlu0 2
    %308 = vperm.xlu0 %307, %v278
    %v309 = vpop.permute.xlu0 %308
    %312 = vset.pattern.permute.xlu0 2
    %313 = vperm.xlu0 %312, %v279
    %v314 = vpop.permute.xlu0 %313
    %317 = vset.pattern.permute.xlu0 2
    %318 = vperm.xlu0 %317, %v280
    %v319 = vpop.permute.xlu0 %318
    %322 = vset.pattern.permute.xlu0 2
    %323 = vperm.xlu0 %322, %v281
    %v324 = vpop.permute.xlu0 %323
    %v326 = vmul.f32 %v173, %v309
    %v327 = vmul.f32 %v175, %v314
    %v328 = vmul.f32 %v178, %v319
    %v329 = vmul.f32 %v180, %v324
    %331 = vset.pattern.permute.xlu0 3
    %332 = vperm.xlu0 %331, %v302
    %v333 = vpop.permute.xlu0 %332
    %336 = vset.pattern.permute.xlu0 3
    %337 = vperm.xlu0 %336, %v303
    %v338 = vpop.permute.xlu0 %337
    %341 = vset.pattern.permute.xlu0 3
    %342 = vperm.xlu0 %341, %v304
    %v343 = vpop.permute.xlu0 %342
    %346 = vset.pattern.permute.xlu0 3
    %347 = vperm.xlu0 %346, %v305
    %v348 = vpop.permute.xlu0 %347
    %v350 = vadd.f32 %v326, %v333
    %v351 = vadd.f32 %v327, %v338
    %v352 = vadd.f32 %v328, %v343
    %v353 = vadd.f32 %v329, %v348
    %v354 = vmax.f32 %v350, 0.0
    %v355 = vmax.f32 %v351, 0.0
    %v356 = vmax.f32 %v352, 0.0
    %v357 = vmax.f32 %v353, 0.0
    %v358 = vpack.c.bf16 %v355, %v354
    %v359 = vpack.c.bf16 %v357, %v356
    %v360 = vld [vmem:[%s1 + $0x18] sm:$0xf]
    %v361 = vld [vmem:[%s1 + $0x1c] sm:$0xf]
    %v362 = vld [vmem:[%s1 + $0x20] sm:$0xf]
    %v363 = vld [vmem:[%s1 + $0x24] sm:$0xf]
    %v364 = vld [vmem:[%s1 + $0x28] sm:$0xf]
    %v365 = vld [vmem:[%s1 + $0x2c] sm:$0xf]
    %v366 = vld [vmem:[%s1 + $0x30] sm:$0xf]
    %v367 = vld [vmem:[%s1 + $0x34] sm:$0xf]
    %v376 = vunpack.c.l.b16 %v360
    %v377 = vunpack.c.l.b16 %v361
    %v378 = vunpack.c.l.b16 %v362
    %v379 = vunpack.c.l.b16 %v363
    %v380 = vunpack.c.l.b16 %v364
    %v381 = vunpack.c.l.b16 %v365
    %v382 = vunpack.c.l.b16 %v366
    %v383 = vunpack.c.l.b16 %v367
    %v384 = vpack.c.b16 %v377, %v376
    %v385 = vpack.c.b16 %v379, %v378
    %v386 = vpack.c.b16 %v381, %v380
    %v387 = vpack.c.b16 %v383, %v382
    %vm388 = vcmask 261120
    %v390 = vsel %vm388, %v384, 0
    %v393 = vsel %vm388, %v385, 0
    %v396 = vsel %vm388, %v386, 0
    %v399 = vsel %vm388, %v387, 0
    %401 = vmatpush.bf16.msra.mxu0 0
    %402 = vmatpush.bf16.msra.mxu0 0
    %403 = vmatpush.bf16.msra.mxu0 0
    %404 = vmatpush.bf16.msra.mxu0 0
    %405 = vmatpush.bf16.msra.mxu0 0
    %406 = vmatpush.bf16.msra.mxu0 0
    %407 = vmatpush.bf16.msra.mxu0 %v359
    %408 = vmatpush.bf16.msra.mxu0 %v358
    %409 = vmatmul.bf16.gmra.mxu0 %v390
    %v410 = vpop.f32.mrf.mxu0
    %v411 = vadd.f32 0.0, %v410
    %v412 = vpop.f32.mrf.mxu0
    %v413 = vadd.f32 0.0, %v412
    %414 = vmatmul.bf16.gmra.mxu0 %v393
    %v415 = vpop.f32.mrf.mxu0
    %v416 = vadd.f32 0.0, %v415
    %v417 = vpop.f32.mrf.mxu0
    %v418 = vadd.f32 0.0, %v417
    %419 = vmatmul.bf16.gmra.mxu0 %v396
    %v420 = vpop.f32.mrf.mxu0
    %v421 = vadd.f32 0.0, %v420
    %v422 = vpop.f32.mrf.mxu0
    %v423 = vadd.f32 0.0, %v422
    %424 = vmatmul.bf16.gmra.mxu0 %v399
    %v425 = vpop.f32.mrf.mxu0
    %v426 = vadd.f32 0.0, %v425
    %v427 = vpop.f32.mrf.mxu0
    %v428 = vadd.f32 0.0, %v427
    %429 = vdwg.mxu0
    %v430 = vsel %vm52, %v411, 0.0
    %431 = vadd.xlane.f32.xlu0 %v430
    %v432 = vpop.xlane.xlu0 %431
    %v433 = vsel %vm52, %v413, 0.0
    %434 = vadd.xlane.f32.xlu0 %v433
    %v435 = vpop.xlane.xlu0 %434
    %v436 = vsel %vm52, %v416, 0.0
    %437 = vadd.xlane.f32.xlu0 %v436
    %v438 = vpop.xlane.xlu0 %437
    %v439 = vsel %vm52, %v418, 0.0
    %440 = vadd.xlane.f32.xlu0 %v439
    %v441 = vpop.xlane.xlu0 %440
    %v442 = vsel %vm52, %v421, 0.0
    %443 = vadd.xlane.f32.xlu0 %v442
    %v444 = vpop.xlane.xlu0 %443
    %v445 = vsel %vm52, %v423, 0.0
    %446 = vadd.xlane.f32.xlu0 %v445
    %v447 = vpop.xlane.xlu0 %446
    %v448 = vsel %vm52, %v426, 0.0
    %449 = vadd.xlane.f32.xlu0 %v448
    %v450 = vpop.xlane.xlu0 %449
    %v451 = vsel %vm52, %v428, 0.0
    %452 = vadd.xlane.f32.xlu0 %v451
    %v453 = vpop.xlane.xlu0 %452
    %v454 = vmul.f32 %v432, 0.125
    %v455 = vmul.f32 %v435, 0.125
    %v456 = vmul.f32 %v438, 0.125
    %v457 = vmul.f32 %v441, 0.125
    %v458 = vmul.f32 %v444, 0.125
    %v459 = vmul.f32 %v447, 0.125
    %v460 = vmul.f32 %v450, 0.125
    %v461 = vmul.f32 %v453, 0.125
    %v462 = vmul.f32 %v411, %v411
    %v463 = vmul.f32 %v413, %v413
    %v464 = vmul.f32 %v416, %v416
    %v465 = vmul.f32 %v418, %v418
    %v466 = vmul.f32 %v421, %v421
    %v467 = vmul.f32 %v423, %v423
    %v468 = vmul.f32 %v426, %v426
    %v469 = vmul.f32 %v428, %v428
    %v470 = vsel %vm52, %v462, 0.0
    %471 = vadd.xlane.f32.xlu0 %v470
    %v472 = vpop.xlane.xlu0 %471
    %v473 = vsel %vm52, %v463, 0.0
    %474 = vadd.xlane.f32.xlu0 %v473
    %v475 = vpop.xlane.xlu0 %474
    %v476 = vsel %vm52, %v464, 0.0
    %477 = vadd.xlane.f32.xlu0 %v476
    %v478 = vpop.xlane.xlu0 %477
    %v479 = vsel %vm52, %v465, 0.0
    %480 = vadd.xlane.f32.xlu0 %v479
    %v481 = vpop.xlane.xlu0 %480
    %v482 = vsel %vm52, %v466, 0.0
    %483 = vadd.xlane.f32.xlu0 %v482
    %v484 = vpop.xlane.xlu0 %483
    %v485 = vsel %vm52, %v467, 0.0
    %486 = vadd.xlane.f32.xlu0 %v485
    %v487 = vpop.xlane.xlu0 %486
    %v488 = vsel %vm52, %v468, 0.0
    %489 = vadd.xlane.f32.xlu0 %v488
    %v490 = vpop.xlane.xlu0 %489
    %v491 = vsel %vm52, %v469, 0.0
    %492 = vadd.xlane.f32.xlu0 %v491
    %v493 = vpop.xlane.xlu0 %492
    %v494 = vmul.f32 %v472, 0.125
    %v495 = vmul.f32 %v475, 0.125
    %v496 = vmul.f32 %v478, 0.125
    %v497 = vmul.f32 %v481, 0.125
    %v498 = vmul.f32 %v484, 0.125
    %v499 = vmul.f32 %v487, 0.125
    %v500 = vmul.f32 %v490, 0.125
    %v501 = vmul.f32 %v493, 0.125
    %v502 = vmul.f32 %v454, %v454
    %v503 = vmul.f32 %v455, %v455
    %v504 = vmul.f32 %v456, %v456
    %v505 = vmul.f32 %v457, %v457
    %v506 = vmul.f32 %v458, %v458
    %v507 = vmul.f32 %v459, %v459
    %v508 = vmul.f32 %v460, %v460
    %v509 = vmul.f32 %v461, %v461
    %v510 = vsub.f32 %v494, %v502
    %v511 = vsub.f32 %v495, %v503
    %v512 = vsub.f32 %v496, %v504
    %v513 = vsub.f32 %v497, %v505
    %v514 = vsub.f32 %v498, %v506
    %v515 = vsub.f32 %v499, %v507
    %v516 = vsub.f32 %v500, %v508
    %v517 = vsub.f32 %v501, %v509
    %v518 = vmax.f32 %v510, 0.0
    %v519 = vmax.f32 %v511, 0.0
    %v520 = vmax.f32 %v512, 0.0
    %v521 = vmax.f32 %v513, 0.0
    %v522 = vmax.f32 %v514, 0.0
    %v523 = vmax.f32 %v515, 0.0
    %v524 = vmax.f32 %v516, 0.0
    %v525 = vmax.f32 %v517, 0.0
    %v526 = vld [vmem:[%s2] sm:$0xff]
    %v527 = vld [vmem:[%s2 + $0x8] sm:$0xff]
    %v528 = vld [vmem:[%s2 + $0x10] sm:$0xff]
    %v529 = vld [vmem:[%s2 + $0x18] sm:$0xff]
    %v530 = vld [vmem:[%s2 + $0x20] sm:$0xff]
    %v531 = vld [vmem:[%s2 + $0x28] sm:$0xff]
    %v532 = vld [vmem:[%s2 + $0x30] sm:$0xff]
    %v533 = vld [vmem:[%s2 + $0x38] sm:$0xff]
    %v534 = vadd.f32 %v518, 1e-05
    %v535 = vadd.f32 %v519, 1e-05
    %v536 = vadd.f32 %v520, 1e-05
    %v537 = vadd.f32 %v521, 1e-05
    %v538 = vadd.f32 %v522, 1e-05
    %v539 = vadd.f32 %v523, 1e-05
    %v540 = vadd.f32 %v524, 1e-05
    %v541 = vadd.f32 %v525, 1e-05
    %v542 = vrsqrt.pop %v534
    %v543 = vmul.f32 %v542, %v534
    %v544 = vmul.f32 %v543, %v542
    %v545 = vmul.f32 0.5, %v544
    %v546 = vsub.f32 1.5, %v545
    %v547 = vmul.f32 %v542, %v546
    %vm548 = vweird.f32 %v534
    %vm549 = vweird.f32 %v542
    %vm550 = vmor %vm548, %vm549
    %v551 = vsel %vm550, %v542, %v547
    %v552 = vrsqrt.pop %v535
    %v553 = vmul.f32 %v552, %v535
    %v554 = vmul.f32 %v553, %v552
    %v555 = vmul.f32 0.5, %v554
    %v556 = vsub.f32 1.5, %v555
    %v557 = vmul.f32 %v552, %v556
    %vm558 = vweird.f32 %v535
    %vm559 = vweird.f32 %v552
    %vm560 = vmor %vm558, %vm559
    %v561 = vsel %vm560, %v552, %v557
    %v562 = vrsqrt.pop %v536
    %v563 = vmul.f32 %v562, %v536
    %v564 = vmul.f32 %v563, %v562
    %v565 = vmul.f32 0.5, %v564
    %v566 = vsub.f32 1.5, %v565
    %v567 = vmul.f32 %v562, %v566
    %vm568 = vweird.f32 %v536
    %vm569 = vweird.f32 %v562
    %vm570 = vmor %vm568, %vm569
    %v571 = vsel %vm570, %v562, %v567
    %v572 = vrsqrt.pop %v537
    %v573 = vmul.f32 %v572, %v537
    %v574 = vmul.f32 %v573, %v572
    %v575 = vmul.f32 0.5, %v574
    %v576 = vsub.f32 1.5, %v575
    %v577 = vmul.f32 %v572, %v576
    %vm578 = vweird.f32 %v537
    %vm579 = vweird.f32 %v572
    %vm580 = vmor %vm578, %vm579
    %v581 = vsel %vm580, %v572, %v577
    %v582 = vrsqrt.pop %v538
    %v583 = vmul.f32 %v582, %v538
    %v584 = vmul.f32 %v583, %v582
    %v585 = vmul.f32 0.5, %v584
    %v586 = vsub.f32 1.5, %v585
    %v587 = vmul.f32 %v582, %v586
    %vm588 = vweird.f32 %v538
    %vm589 = vweird.f32 %v582
    %vm590 = vmor %vm588, %vm589
    %v591 = vsel %vm590, %v582, %v587
    %v592 = vrsqrt.pop %v539
    %v593 = vmul.f32 %v592, %v539
    %v594 = vmul.f32 %v593, %v592
    %v595 = vmul.f32 0.5, %v594
    %v596 = vsub.f32 1.5, %v595
    %v597 = vmul.f32 %v592, %v596
    %vm598 = vweird.f32 %v539
    %vm599 = vweird.f32 %v592
    %vm600 = vmor %vm598, %vm599
    %v601 = vsel %vm600, %v592, %v597
    %v602 = vrsqrt.pop %v540
    %v603 = vmul.f32 %v602, %v540
    %v604 = vmul.f32 %v603, %v602
    %v605 = vmul.f32 0.5, %v604
    %v606 = vsub.f32 1.5, %v605
    %v607 = vmul.f32 %v602, %v606
    %vm608 = vweird.f32 %v540
    %vm609 = vweird.f32 %v602
    %vm610 = vmor %vm608, %vm609
    %v611 = vsel %vm610, %v602, %v607
    %v612 = vrsqrt.pop %v541
    %v613 = vmul.f32 %v612, %v541
    %v614 = vmul.f32 %v613, %v612
    %v615 = vmul.f32 0.5, %v614
    %v616 = vsub.f32 1.5, %v615
    %v617 = vmul.f32 %v612, %v616
    %vm618 = vweird.f32 %v541
    %vm619 = vweird.f32 %v612
    %vm620 = vmor %vm618, %vm619
    %v621 = vsel %vm620, %v612, %v617
    %v622 = vmul.f32 %v526, %v551
    %v623 = vmul.f32 %v527, %v561
    %v624 = vmul.f32 %v528, %v571
    %v625 = vmul.f32 %v529, %v581
    %v626 = vmul.f32 %v530, %v591
    %v627 = vmul.f32 %v531, %v601
    %v628 = vmul.f32 %v532, %v611
    %v629 = vmul.f32 %v533, %v621
    %v630 = vmul.f32 %v454, %v622
    %v631 = vmul.f32 %v455, %v623
    %v632 = vmul.f32 %v456, %v624
    %v633 = vmul.f32 %v457, %v625
    %v634 = vmul.f32 %v458, %v626
    %v635 = vmul.f32 %v459, %v627
    %v636 = vmul.f32 %v460, %v628
    %v637 = vmul.f32 %v461, %v629
    %646 = vrot.lane.b32.xlu0 %v630, 1
    %v647 = vpop.permute.xlu0 %646
    %648 = vrot.lane.b32.xlu0 %v631, 1
    %v649 = vpop.permute.xlu0 %648
    %650 = vrot.lane.b32.xlu0 %v632, 1
    %v651 = vpop.permute.xlu0 %650
    %652 = vrot.lane.b32.xlu0 %v633, 1
    %v653 = vpop.permute.xlu0 %652
    %654 = vrot.lane.b32.xlu0 %v634, 1
    %v655 = vpop.permute.xlu0 %654
    %656 = vrot.lane.b32.xlu0 %v635, 1
    %v657 = vpop.permute.xlu0 %656
    %658 = vrot.lane.b32.xlu0 %v636, 1
    %v659 = vpop.permute.xlu0 %658
    %660 = vrot.lane.b32.xlu0 %v637, 1
    %v661 = vpop.permute.xlu0 %660
    %v670 = vsub.f32 %v526, %v647
    %v671 = vsub.f32 %v527, %v649
    %v672 = vsub.f32 %v528, %v651
    %v673 = vsub.f32 %v529, %v653
    %v674 = vsub.f32 %v530, %v655
    %v675 = vsub.f32 %v531, %v657
    %v676 = vsub.f32 %v532, %v659
    %v677 = vsub.f32 %v533, %v661
    %679 = vset.pattern.permute.xlu0 4
    %680 = vperm.xlu0 %679, %v622
    %v681 = vpop.permute.xlu0 %680
    %684 = vset.pattern.permute.xlu0 4
    %685 = vperm.xlu0 %684, %v623
    %v686 = vpop.permute.xlu0 %685
    %689 = vset.pattern.permute.xlu0 4
    %690 = vperm.xlu0 %689, %v624
    %v691 = vpop.permute.xlu0 %690
    %694 = vset.pattern.permute.xlu0 4
    %695 = vperm.xlu0 %694, %v625
    %v696 = vpop.permute.xlu0 %695
    %699 = vset.pattern.permute.xlu0 4
    %700 = vperm.xlu0 %699, %v626
    %v701 = vpop.permute.xlu0 %700
    %704 = vset.pattern.permute.xlu0 4
    %705 = vperm.xlu0 %704, %v627
    %v706 = vpop.permute.xlu0 %705
    %709 = vset.pattern.permute.xlu0 4
    %710 = vperm.xlu0 %709, %v628
    %v711 = vpop.permute.xlu0 %710
    %714 = vset.pattern.permute.xlu0 4
    %715 = vperm.xlu0 %714, %v629
    %v716 = vpop.permute.xlu0 %715
    %v718 = vmul.f32 %v411, %v681
    %v719 = vmul.f32 %v413, %v686
    %v720 = vmul.f32 %v416, %v691
    %v721 = vmul.f32 %v418, %v696
    %v722 = vmul.f32 %v421, %v701
    %v723 = vmul.f32 %v423, %v706
    %v724 = vmul.f32 %v426, %v711
    %v725 = vmul.f32 %v428, %v716
    %727 = vset.pattern.permute.xlu0 5
    %728 = vperm.xlu0 %727, %v670
    %v729 = vpop.permute.xlu0 %728
    %732 = vset.pattern.permute.xlu0 5
    %733 = vperm.xlu0 %732, %v671
    %v734 = vpop.permute.xlu0 %733
    %737 = vset.pattern.permute.xlu0 5
    %738 = vperm.xlu0 %737, %v672
    %v739 = vpop.permute.xlu0 %738
    %742 = vset.pattern.permute.xlu0 5
    %743 = vperm.xlu0 %742, %v673
    %v744 = vpop.permute.xlu0 %743
    %747 = vset.pattern.permute.xlu0 5
    %748 = vperm.xlu0 %747, %v674
    %v749 = vpop.permute.xlu0 %748
    %752 = vset.pattern.permute.xlu0 5
    %753 = vperm.xlu0 %752, %v675
    %v754 = vpop.permute.xlu0 %753
    %757 = vset.pattern.permute.xlu0 5
    %758 = vperm.xlu0 %757, %v676
    %v759 = vpop.permute.xlu0 %758
    %762 = vset.pattern.permute.xlu0 5
    %763 = vperm.xlu0 %762, %v677
    %v764 = vpop.permute.xlu0 %763
    %v766 = vadd.f32 %v718, %v729
    %v767 = vadd.f32 %v719, %v734
    %v768 = vadd.f32 %v720, %v739
    %v769 = vadd.f32 %v721, %v744
    %v770 = vadd.f32 %v722, %v749
    %v771 = vadd.f32 %v723, %v754
    %v772 = vadd.f32 %v724, %v759
    %v773 = vadd.f32 %v725, %v764
    %v774 = vmax.f32 %v766, 0.0
    %v775 = vmax.f32 %v767, 0.0
    %v776 = vmax.f32 %v768, 0.0
    %v777 = vmax.f32 %v769, 0.0
    %v778 = vmax.f32 %v770, 0.0
    %v779 = vmax.f32 %v771, 0.0
    %v780 = vmax.f32 %v772, 0.0
    %v781 = vmax.f32 %v773, 0.0
    %v782 = vpack.c.bf16 %v775, %v774
    %v783 = vpack.c.bf16 %v777, %v776
    %v784 = vpack.c.bf16 %v779, %v778
    %v785 = vpack.c.bf16 %v781, %v780
    %v786 = vld [vmem:[%s1 + $0x38] sm:$0x3]
    %v787 = vld [vmem:[%s2] sm:$0xf]
    %789 = vset.pattern.permute.xlu0 6
    %790 = vperm.xlu0 %789, %v787
    %v791 = vpop.permute.xlu0 %790
    %vm793 = vcmask 523264
    %v795 = vsel %vm793, %v786, 0
    %797 = vmatpush.bf16.msra.mxu0 0
    %798 = vmatpush.bf16.msra.mxu0 0
    %799 = vmatpush.bf16.msra.mxu0 0
    %800 = vmatpush.bf16.msra.mxu0 0
    %801 = vmatpush.bf16.msra.mxu0 %v785
    %802 = vmatpush.bf16.msra.mxu0 %v784
    %803 = vmatpush.bf16.msra.mxu0 %v783
    %804 = vmatpush.bf16.msra.mxu0 %v782
    %805 = vmatmul.bf16.gmra.mxu0 %v795
    %v806 = vpop.f32.mrf.mxu0
    %v807 = vadd.f32 %v791, %v806
    %v808 = vpop.f32.mrf.mxu0
    %809 = vdwg.mxu0
    %vm810 = vcmask 60416
    %811 = vst.msk [vmem:[#allocation2] sm:$0xf] %vm810, %v807
    // Predicated region
    $region14: #{tpu_custom_call.1} parent=1 // pred_check
      _
    $region15: #{tpu_custom_call.1} parent=1 // pred_check_branch
      %813 = sbr.rel (0) target = $region17
    $region16: #{tpu_custom_call.1} parent=1 // pred_region
      %815 = vsyncadd [#allocation3], 0
      %s817 = sshll.u32 [#allocation2], 4
      %s818 = int_to_ptr.vmem [resolvable:$true] %s817
      %s819 = sshll.u32 %s3, 4
      %s820 = int_to_ptr.hbm [resolvable:$true] %s819
      %822 = dma.vmem_to_hbm [thread:$0]  %s818, 64, %s820, [#allocation3]
    $region17: #{tpu_custom_call.1} parent=1 // pred_fallthru
      _
    // Predicated region
    $region18: #{tpu_custom_call.1} parent=1 // pred_check
      _
    $region19: #{tpu_custom_call.1} parent=1 // pred_check_branch
      %824 = sbr.rel (0) target = $region21
    $region20: #{tpu_custom_call.1} parent=1 // pred_region
      %826 = dma.done [#allocation3], 64
    $region21: #{tpu_custom_call.1} parent=1 // pred_fallthru
      _
    %827 = vsyncpa [#allocation3], 1

</llo_original>
